<compile_context>
chip_gen: v5e
topology: v5e:2x2
jax: 0.10.0
libtpu: 0.0.40
codegen_flags: <defaults>
</compile_context>

<pallas_src>
import numpy as np
import jax
import jax.numpy as jnp
from jax import lax
from jax.experimental import pallas as pl
from jax.experimental.pallas import tpu as pltpu


VMEM_SPEC = pl.BlockSpec(memory_space=pltpu.MemorySpace.VMEM)


# ----------------------------------------------------------------------------
# Kernel 1: fused convs (im2col) + ReLU + layer-0 LSTM input projection
#   x      : (D1, D0, E)
#   w_conv : (kmax*E, F_total)   fused im2col weight (smaller kernels zero-padded)
#   b_conv : (1, F_total)
#   w_gate : (F_total, 8H)       [Wi_fwd(4H) | Wi_bwd(4H)], gate order i,f,g,o
#   b_gate : (1, 8H)             b_ih + b_hh fused, both directions
#   out    : (D1, D0, 8H)        gate pre-activations (input part) for layer 0
# ----------------------------------------------------------------------------
def conv_gate_pallas(x, w_conv, b_conv, w_gate, b_gate, kmax):
    D1, D0, E = x.shape
    Ftot = w_conv.shape[-1]
    G8 = w_gate.shape[-1]
    pad = kmax // 2
    Lp = D0 + 2 * pad
    TD1 = min(D1, 64)                    # many timesteps per grid step

    def kernel(x_ref, wc_ref, bc_ref, wg_ref, bg_ref, o_ref, xp_ref):
        # Zero-pad along D0 in VMEM scratch (no HBM copy of a padded input).
        if pad > 0:
            zpad = jnp.zeros((TD1, pad, E), jnp.float32)
            xp_ref[:, 0:pad, :] = zpad
            xp_ref[:, pad + D0:Lp, :] = zpad
        xp_ref[:, pad:pad + D0, :] = x_ref[...]
        # im2col: one matmul with K = kmax*E instead of kmax matmuls with K = E.
        patches = jnp.concatenate(
            [xp_ref[:, j:j + D0, :] for j in range(kmax)], axis=-1)  # (TD1,D0,kmax*E)
        p2 = patches.reshape(TD1 * D0, kmax * E)
        conv = jnp.dot(p2, wc_ref[...], preferred_element_type=jnp.float32)
        conv = jnp.maximum(conv + bc_ref[...], 0.0)                  # ReLU
        # Hoisted LSTM input projection (both directions, gates packed).
        g = jnp.dot(conv, wg_ref[...], preferred_element_type=jnp.float32)
        o_ref[...] = (g + bg_ref[...]).reshape(TD1, D0, G8)

    return pl.pallas_call(
        kernel,
        out_shape=jax.ShapeDtypeStruct((D1, D0, G8), jnp.float32),
        grid=(pl.cdiv(D1, TD1),),
        in_specs=[
            pl.BlockSpec((TD1, D0, E), lambda n: (n, 0, 0)),
            pl.BlockSpec((kmax * E, Ftot), lambda n: (0, 0)),
            pl.BlockSpec((1, Ftot), lambda n: (0, 0)),
            pl.BlockSpec((Ftot, G8), lambda n: (0, 0)),
            pl.BlockSpec((1, G8), lambda n: (0, 0)),
        ],
        out_specs=pl.BlockSpec((TD1, D0, G8), lambda n: (n, 0, 0)),
        scratch_shapes=[pltpu.VMEM((TD1, Lp, E), jnp.float32)],
        compiler_params=pltpu.CompilerParams(dimension_semantics=("parallel",)),
    )(x, w_conv, b_conv, w_gate, b_gate)


# ----------------------------------------------------------------------------
# Kernel 2: LSTM input projection for layers >= 1 (one big matmul, hoisted out
# of the recurrence):  h(D1,D0,Din) @ [Wi_f|Wi_b](Din,8H) + b(1,8H)
# ----------------------------------------------------------------------------
def gate_proj_pallas(h, w_gate, b_gate):
    D1, D0, Din = h.shape
    G8 = w_gate.shape[-1]
    TD1 = min(D1, 64)

    def kernel(h_ref, wg_ref, bg_ref, o_ref):
        h2 = h_ref[...].reshape(TD1 * D0, Din)
        g = jnp.dot(h2, wg_ref[...], preferred_element_type=jnp.float32)
        o_ref[...] = (g + bg_ref[...]).reshape(TD1, D0, G8)

    return pl.pallas_call(
        kernel,
        out_shape=jax.ShapeDtypeStruct((D1, D0, G8), jnp.float32),
        grid=(pl.cdiv(D1, TD1),),
        in_specs=[
            pl.BlockSpec((TD1, D0, Din), lambda n: (n, 0, 0)),
            pl.BlockSpec((Din, G8), lambda n: (0, 0)),
            pl.BlockSpec((1, G8), lambda n: (0, 0)),
        ],
        out_specs=pl.BlockSpec((TD1, D0, G8), lambda n: (n, 0, 0)),
        compiler_params=pltpu.CompilerParams(dimension_semantics=("parallel",)),
    )(h, w_gate, b_gate)


# Shared gate-packed LSTM cell (PyTorch gate order i, f, g, o).
def _lstm_step(xg_t, h, c, wh, H):
    # xg_t: (D0, 4H) = precomputed x_t @ Wi + b ;  wh: (H, 4H)
    g = xg_t + jnp.dot(h, wh, preferred_element_type=jnp.float32)
    i_g = jax.nn.sigmoid(g[:, 0:H])
    f_g = jax.nn.sigmoid(g[:, H:2 * H])
    g_g = jnp.tanh(g[:, 2 * H:3 * H])
    o_g = jax.nn.sigmoid(g[:, 3 * H:4 * H])
    c_n = f_g * c + i_g * g_g
    h_n = o_g * jnp.tanh(c_n)
    return h_n, c_n


# ----------------------------------------------------------------------------
# Kernel 3: bidirectional LSTM recurrence (intermediate layers).
#   xg : (D1, D0, 8H)  [fwd gates 0:4H | bwd gates 4H:8H]    wh_*: (H, 4H)
#   out: (D1, D0, 2H)  [h_fwd | h_bwd], single lane-concatenated output.
# ----------------------------------------------------------------------------
def bilstm_pallas(xg, wh_f, wh_b):
    D1, D0, _ = xg.shape
    H = wh_f.shape[0]
    G = 4 * H

    def kernel(xg_ref, whf_ref, whb_ref, o_ref, hf_buf, hb_buf):
        whf, whb = whf_ref[...], whb_ref[...]
        z = jnp.zeros((D0, H), jnp.float32)

        # Interleave fwd (t) and bwd (D1-1-t): the two recurrences are
        # independent, so their matmuls / EUP ops overlap.
        def body(t, carry):
            hf, cf, hb, cb = carry
            tb = D1 - 1 - t
            hf, cf = _lstm_step(xg_ref[t][:, 0:G], hf, cf, whf, H)
            hb, cb = _lstm_step(xg_ref[tb][:, G:2 * G], hb, cb, whb, H)
            hf_buf[t] = hf
            hb_buf[tb] = hb
            return (hf, cf, hb, cb)

        lax.fori_loop(0, D1, body, (z, z, z, z), unroll=True)
        o_ref[...] = jnp.concatenate([hf_buf[...], hb_buf[...]], axis=-1)

    # TODO(synk): for large D1*D0 (esp. v7x 64 MiB VMEM) stream xg/out over D1
    # windows with double-buffered DMA and shard a "parallel" D0-block grid
    # axis across the two TensorCores; unnecessary at these sizes.
    return pl.pallas_call(
        kernel,
        out_shape=jax.ShapeDtypeStruct((D1, D0, 2 * H), jnp.float32),
        in_specs=[VMEM_SPEC] * 3,
        out_specs=VMEM_SPEC,
        scratch_shapes=[pltpu.VMEM((D1, D0, H), jnp.float32),
                        pltpu.VMEM((D1, D0, H), jnp.float32)],
    )(xg, wh_f, wh_b)


# ----------------------------------------------------------------------------
# Kernel 4: last BiLSTM layer with the head fused in
# (tanh -> max over D0 -> Linear).  Hidden states never leave VMEM.
#   out: (D1, num_class)
# ----------------------------------------------------------------------------
def bilstm_head_pallas(xg, wh_f, wh_b, w_head, b_head):
    D1, D0, _ = xg.shape
    H = wh_f.shape[0]
    G = 4 * H
    C = w_head.shape[-1]

    def kernel(xg_ref, whf_ref, whb_ref, wo_ref, bo_ref, o_ref, pf_buf, pb_buf):
        whf, whb = whf_ref[...], whb_ref[...]
        z = jnp.zeros((D0, H), jnp.float32)

        def body(t, carry):
            hf, cf, hb, cb = carry
            tb = D1 - 1 - t
            hf, cf = _lstm_step(xg_ref[t][:, 0:G], hf, cf, whf, H)
            hb, cb = _lstm_step(xg_ref[tb][:, G:2 * G], hb, cb, whb, H)
            # Running head pooling: max over D0 of tanh(h_t), per direction.
            pf_buf[pl.ds(t, 1), :] = jnp.max(jnp.tanh(hf), axis=0, keepdims=True)
            pb_buf[pl.ds(tb, 1), :] = jnp.max(jnp.tanh(hb), axis=0, keepdims=True)
            return (hf, cf, hb, cb)

        lax.fori_loop(0, D1, body, (z, z, z, z), unroll=True)
        pooled = jnp.concatenate([pf_buf[...], pb_buf[...]], axis=-1)   # (D1, 2H)
        o_ref[...] = (jnp.dot(pooled, wo_ref[...],
                              preferred_element_type=jnp.float32) + bo_ref[...])

    return pl.pallas_call(
        kernel,
        out_shape=jax.ShapeDtypeStruct((D1, C), jnp.float32),
        in_specs=[VMEM_SPEC] * 5,
        out_specs=VMEM_SPEC,
        scratch_shapes=[pltpu.VMEM((D1, H), jnp.float32),
                        pltpu.VMEM((D1, H), jnp.float32)],
    )(xg, wh_f, wh_b, w_head, b_head)


# ----------------------------------------------------------------------------
# Parameter re-layout: PyTorch-style per-gate / per-conv weights -> fused,
# gate-packed layouts the kernels expect (done once, outside the kernels).
# ----------------------------------------------------------------------------
def pack_params(params, kk, embed):
    kmax = max(kk)
    pad_max = kmax // 2
    cols, biases = [], []
    for p, k in zip(params["convs"], kk):
        w = p["w"]                                         # (k, E, F)
        off = pad_max - k // 2
        w_full = jnp.zeros((kmax, embed, w.shape[-1]), jnp.float32)
        w_full = w_full.at[off:off + k].set(w)
        cols.append(w_full.reshape(kmax * embed, w.shape[-1]))
        biases.append(p["b"])                              # (1, F)
    packed = {
        "kmax": kmax,
        "w_conv": jnp.concatenate(cols, axis=-1),          # (kmax*E, F_total)
        "b_conv": jnp.concatenate(biases, axis=-1),        # (1, F_total)
        "head_w": params["head"]["w"],                     # (2H, C)
        "head_b": params["head"]["b"],                     # (1, C)
        "lstm": [],
    }
    for layer in params["lstm"]:
        def pack_dir(d):
            wi = jnp.concatenate([d["wi"][j] for j in range(4)], axis=-1)  # (Din,4H)
            wh = jnp.concatenate([d["wh"][j] for j in range(4)], axis=-1)  # (H,4H)
            b = jnp.concatenate([d["b"][j] for j in range(4)], axis=-1)    # (1,4H)
            return wi, wh, b
        wif, whf, bf = pack_dir(layer["f"])
        wib, whb, bb = pack_dir(layer["b"])
        packed["lstm"].append({
            "wi_all": jnp.concatenate([wif, wib], axis=-1),   # (Din, 8H)
            "b_all": jnp.concatenate([bf, bb], axis=-1),      # (1, 8H)
            "wh_f": whf,
            "wh_b": whb,
        })
    return packed


# ----------------------------------------------------------------------------
# Full forward (glue in plain JAX, compute in the Pallas kernels above).
# ----------------------------------------------------------------------------
def sent_clstm_forward(x, packed):
    # torch.transpose(input, 1, 0); dropout = identity (inference path).
    # TODO(synk): train-mode stochastic dropout not implemented.
    x_t = jnp.transpose(x, (1, 0, 2))                       # (D1, D0, E)
    layer0 = packed["lstm"][0]
    # Fused convs + ReLU + layer-0 input projection -> (D1, D0, 8H)
    xg = conv_gate_pallas(x_t, packed["w_conv"], packed["b_conv"],
                          layer0["wi_all"], layer0["b_all"], packed["kmax"])
    num_layers = len(packed["lstm"])
    h = None
    for l, layer in enumerate(packed["lstm"]):
        if l > 0:   # inter-layer dropout is identity in eval mode
            xg = gate_proj_pallas(h, layer["wi_all"], layer["b_all"])
        if l == num_layers - 1:
            return bilstm_head_pallas(xg, layer["wh_f"], layer["wh_b"],
                                      packed["head_w"], packed["head_b"])
        h = bilstm_pallas(xg, layer["wh_f"], layer["wh_b"])


# ----------------------------------------------------------------------------
# Pure-JAX reference (same math, no Pallas) for a numerical sanity check.
# ----------------------------------------------------------------------------
def reference_forward(x, params, kk):
    x_t = jnp.transpose(x, (1, 0, 2))
    D1, D0, E = x_t.shape
    outs = []
    for p, k in zip(params["convs"], kk):
        w, b = p["w"], p["b"]
        pad = k // 2
        xp = jnp.pad(x_t, ((0, 0), (pad, pad), (0, 0)))
        o = jnp.zeros((D1, D0, w.shape[-1]), jnp.float32)
        for j in range(k):
            o = o + jnp.einsum("nte,ef->ntf", xp[:, j:j + D0, :], w[j])
        outs.append(jnp.maximum(o + b, 0.0))
    h_in = jnp.concatenate(outs, axis=-1)

    def run_dir(xs, p, reverse):
        H = p["wh"].shape[-1]

        def step(carry, x_t_):
            h, c = carry
            g = [x_t_ @ p["wi"][j] + h @ p["wh"][j] + p["b"][j] for j in range(4)]
            i_g = jax.nn.sigmoid(g[0]); f_g = jax.nn.sigmoid(g[1])
            g_g = jnp.tanh(g[2]); o_g = jax.nn.sigmoid(g[3])
            c = f_g * c + i_g * g_g
            h = o_g * jnp.tanh(c)
            return (h, c), h

        init = (jnp.zeros((xs.shape[1], H), jnp.float32),
                jnp.zeros((xs.shape[1], H), jnp.float32))
        _, hs = lax.scan(step, init, xs, reverse=reverse)
        return hs

    for layer in params["lstm"]:
        hf = run_dir(h_in, layer["f"], False)
        hb = run_dir(h_in, layer["b"], True)
        h_in = jnp.concatenate([hf, hb], axis=-1)

    y = jnp.tanh(h_in)
    pooled = jnp.max(y, axis=1)
    return pooled @ params["head"]["w"] + params["head"]["b"]


if __name__ == "__main__":
    # Synthetic args (consistent with the module's constraints:
    # sentCLSTM_filter == sentCLSTM_dim, hidden = dim * len(kernels)).
    sent_kernel = [3, 4]
    kk = [k + 1 if k % 2 == 0 else k for k in sent_kernel]     # -> [3, 5]
    filt = 8                     # sentCLSTM_filter == sentCLSTM_dim
    embed = 16                   # sentCLSTM_embed
    num_class = 4
    num_layers = 2               # sentCLSTM_lstm_layer (exercises all kernels)
    H = filt * len(sent_kernel)  # LSTM hidden size = 16  (8H = 128 lanes)

    D0, D1 = 8, 6                # forward input is (D0, D1, embed)

    key = jax.random.PRNGKey(0)
    keys = iter(jax.random.split(key, 64))

    def nrm(shape, scale=0.1):
        return scale * jax.random.normal(next(keys), shape, dtype=jnp.float32)

    x = jax.random.normal(next(keys), (D0, D1, embed), dtype=jnp.float32)

    params = {"convs": [], "lstm": [], "head": None}
    for k in kk:
        params["convs"].append({"w": nrm((k, embed, filt)),
                                "b": nrm((1, filt))})
    din = H
    for _ in range(num_layers):
        layer = {}
        for d in ("f", "b"):
            layer[d] = {"wi": nrm((4, din, H)),
                        "wh": nrm((4, H, H)),
                        "b":  nrm((4, 1, H))}
        params["lstm"].append(layer)
        din = 2 * H
    params["head"] = {"w": nrm((2 * H, num_class)), "b": nrm((1, num_class))}

    packed = pack_params(params, kk, embed)

    out = sent_clstm_forward(x, packed)
    out = jax.block_until_ready(out)

    # High-precision reference; tolerance tightened from 2e-2 to catch
    # gate-packing / layout mistakes while leaving margin for MXU/EUP rounding.
    with jax.default_matmul_precision("highest"):
        ref = reference_forward(x, params, kk)
    np.testing.assert_allclose(np.asarray(out), np.asarray(ref),
                               rtol=1e-3, atol=1e-3)
    assert out.shape == (D1, num_class)
    print("KERNEL_OK")
</pallas_src>

<mosaic_0001>
module attributes {stable_mosaic.version = 11 : i64} {
  func.func @kernel(%arg0: i32, %arg1: memref<6x8x16xf32, #tpu.memory_space<vmem>>, %arg2: memref<80x16xf32, #tpu.memory_space<vmem>>, %arg3: memref<1x16xf32, #tpu.memory_space<vmem>>, %arg4: memref<16x128xf32, #tpu.memory_space<vmem>>, %arg5: memref<1x128xf32, #tpu.memory_space<vmem>>, %arg6: memref<6x8x128xf32, #tpu.memory_space<vmem>>, %arg7: memref<6x12x16xf32, #tpu.memory_space<vmem>>) attributes {dimension_semantics = [#tpu.dimension_semantics<parallel>], iteration_bounds = array<i64: 1>, scalar_prefetch = 0 : i64, scratch_operands = 1 : i64, tpu.core_type = #tpu.core_type<tc>, window_params = [{transform_indices = @transform_0, window_bounds = array<i64: 6, 8, 16>}, {pipeline_mode = #tpu.pipeline_mode<synchronous>, transform_indices = @transform_1, window_bounds = array<i64: 80, 16>}, {pipeline_mode = #tpu.pipeline_mode<synchronous>, transform_indices = @transform_2, window_bounds = array<i64: 1, 16>}, {pipeline_mode = #tpu.pipeline_mode<synchronous>, transform_indices = @transform_3, window_bounds = array<i64: 16, 128>}, {pipeline_mode = #tpu.pipeline_mode<synchronous>, transform_indices = @transform_4, window_bounds = array<i64: 1, 128>}, {transform_indices = @transform_5, window_bounds = array<i64: 6, 8, 128>}]} {
    %cst = arith.constant 0.000000e+00 : f32
    %0 = vector.broadcast %cst : f32 to vector<6x2x16xf32>
    %c0 = arith.constant 0 : index
    %c0_0 = arith.constant 0 : index
    %c0_1 = arith.constant 0 : index
    %1 = vector.load %arg7[%c0, %c0_0, %c0_1] : memref<6x12x16xf32, #tpu.memory_space<vmem>>, vector<6x2x16xf32>
    tpu.vector_store %arg7[%c0, %c0_0, %c0_1], %0 {strides = array<i32>} : memref<6x12x16xf32, #tpu.memory_space<vmem>>, vector<6x2x16xf32>,
    %c0_2 = arith.constant 0 : index
    %c10 = arith.constant 10 : index
    %c0_3 = arith.constant 0 : index
    %2 = vector.load %arg7[%c0_2, %c10, %c0_3] : memref<6x12x16xf32, #tpu.memory_space<vmem>>, vector<6x2x16xf32>
    tpu.vector_store %arg7[%c0_2, %c10, %c0_3], %0 {strides = array<i32>} : memref<6x12x16xf32, #tpu.memory_space<vmem>>, vector<6x2x16xf32>,
    %c0_4 = arith.constant 0 : index
    %c0_5 = arith.constant 0 : index
    %c0_6 = arith.constant 0 : index
    %3 = vector.load %arg1[%c0_4, %c0_5, %c0_6] : memref<6x8x16xf32, #tpu.memory_space<vmem>>, vector<6x8x16xf32>
    %c0_7 = arith.constant 0 : index
    %c2 = arith.constant 2 : index
    %c0_8 = arith.constant 0 : index
    %4 = vector.load %arg7[%c0_7, %c2, %c0_8] : memref<6x12x16xf32, #tpu.memory_space<vmem>>, vector<6x8x16xf32>
    tpu.vector_store %arg7[%c0_7, %c2, %c0_8], %3 {strides = array<i32>} : memref<6x12x16xf32, #tpu.memory_space<vmem>>, vector<6x8x16xf32>,
    %c0_9 = arith.constant 0 : index
    %c0_10 = arith.constant 0 : index
    %c0_11 = arith.constant 0 : index
    %5 = vector.load %arg7[%c0_9, %c0_10, %c0_11] : memref<6x12x16xf32, #tpu.memory_space<vmem>>, vector<6x8x16xf32>
    %c0_12 = arith.constant 0 : index
    %c1 = arith.constant 1 : index
    %c0_13 = arith.constant 0 : index
    %6 = vector.load %arg7[%c0_12, %c1, %c0_13] : memref<6x12x16xf32, #tpu.memory_space<vmem>>, vector<6x8x16xf32>
    %c0_14 = arith.constant 0 : index
    %c2_15 = arith.constant 2 : index
    %c0_16 = arith.constant 0 : index
    %7 = vector.load %arg7[%c0_14, %c2_15, %c0_16] : memref<6x12x16xf32, #tpu.memory_space<vmem>>, vector<6x8x16xf32>
    %c0_17 = arith.constant 0 : index
    %c3 = arith.constant 3 : index
    %c0_18 = arith.constant 0 : index
    %8 = vector.load %arg7[%c0_17, %c3, %c0_18] : memref<6x12x16xf32, #tpu.memory_space<vmem>>, vector<6x8x16xf32>
    %c0_19 = arith.constant 0 : index
    %c4 = arith.constant 4 : index
    %c0_20 = arith.constant 0 : index
    %9 = vector.load %arg7[%c0_19, %c4, %c0_20] : memref<6x12x16xf32, #tpu.memory_space<vmem>>, vector<6x8x16xf32>
    %10 = tpu.concatenate %5, %6, %7, %8, %9 in 2 : vector<6x8x16xf32>, vector<6x8x16xf32>, vector<6x8x16xf32>, vector<6x8x16xf32>, vector<6x8x16xf32> -> vector<6x8x80xf32>
    %11 = vector.shape_cast %10 : vector<6x8x80xf32> to vector<48x80xf32>
    %c0_21 = arith.constant 0 : index
    %c0_22 = arith.constant 0 : index
    %12 = vector.load %arg2[%c0_21, %c0_22] : memref<80x16xf32, #tpu.memory_space<vmem>>, vector<80x16xf32>
    %cst_23 = arith.constant dense<0.000000e+00> : vector<48x16xf32>
    %13 = tpu.matmul %11, %12, %cst_23 {dimension_numbers = #tpu.dot_dimension_numbers<[1], [0], [0], [1], [0, 0, 1, 1], [], []>} : vector<48x80xf32>, vector<80x16xf32>, vector<48x16xf32> -> vector<48x16xf32>
    %c0_24 = arith.constant 0 : index
    %c0_25 = arith.constant 0 : index
    %14 = vector.load %arg3[%c0_24, %c0_25] : memref<1x16xf32, #tpu.memory_space<vmem>>, vector<1x16xf32>
    %15 = vector.broadcast %14 : vector<1x16xf32> to vector<48x16xf32>
    %16 = arith.addf %13, %15 : vector<48x16xf32>
    %cst_26 = arith.constant 0.000000e+00 : f32
    %17 = vector.broadcast %cst_26 : f32 to vector<48x16xf32>
    %18 = arith.maximumf %16, %17 : vector<48x16xf32>
    %c0_27 = arith.constant 0 : index
    %c0_28 = arith.constant 0 : index
    %19 = vector.load %arg4[%c0_27, %c0_28] : memref<16x128xf32, #tpu.memory_space<vmem>>, vector<16x128xf32>
    %cst_29 = arith.constant dense<0.000000e+00> : vector<48x128xf32>
    %20 = tpu.matmul %18, %19, %cst_29 {dimension_numbers = #tpu.dot_dimension_numbers<[1], [0], [0], [1], [0, 0, 1, 1], [], []>} : vector<48x16xf32>, vector<16x128xf32>, vector<48x128xf32> -> vector<48x128xf32>
    %c0_30 = arith.constant 0 : index
    %c0_31 = arith.constant 0 : index
    %21 = vector.load %arg5[%c0_30, %c0_31] : memref<1x128xf32, #tpu.memory_space<vmem>>, vector<1x128xf32>
    %22 = vector.broadcast %21 : vector<1x128xf32> to vector<48x128xf32>
    %23 = arith.addf %20, %22 : vector<48x128xf32>
    %24 = vector.shape_cast %23 : vector<48x128xf32> to vector<6x8x128xf32>
    %c0_32 = arith.constant 0 : index
    %c0_33 = arith.constant 0 : index
    %c0_34 = arith.constant 0 : index
    %25 = vector.load %arg6[%c0_32, %c0_33, %c0_34] : memref<6x8x128xf32, #tpu.memory_space<vmem>>, vector<6x8x128xf32>
    tpu.vector_store %arg6[%c0_32, %c0_33, %c0_34], %24 {strides = array<i32>} : memref<6x8x128xf32, #tpu.memory_space<vmem>>, vector<6x8x128xf32>,
    return
  }
  func.func @transform_0(%arg0: i32) -> (i32, i32, i32) {
    %c0_i32 = arith.constant 0 : i32
    %c0_i32_0 = arith.constant 0 : i32
    %c0_i32_1 = arith.constant 0 : i32
    return %arg0, %c0_i32, %c0_i32_0 : i32, i32, i32
  }
  func.func @transform_1(%arg0: i32) -> (i32, i32) {
    %c0_i32 = arith.constant 0 : i32
    %c0_i32_0 = arith.constant 0 : i32
    %c0_i32_1 = arith.constant 0 : i32
    return %c0_i32, %c0_i32_0 : i32, i32
  }
  func.func @transform_2(%arg0: i32) -> (i32, i32) {
    %c0_i32 = arith.constant 0 : i32
    %c0_i32_0 = arith.constant 0 : i32
    %c0_i32_1 = arith.constant 0 : i32
    return %c0_i32, %c0_i32_0 : i32, i32
  }
  func.func @transform_3(%arg0: i32) -> (i32, i32) {
    %c0_i32 = arith.constant 0 : i32
    %c0_i32_0 = arith.constant 0 : i32
    %c0_i32_1 = arith.constant 0 : i32
    return %c0_i32, %c0_i32_0 : i32, i32
  }
  func.func @transform_4(%arg0: i32) -> (i32, i32) {
    %c0_i32 = arith.constant 0 : i32
    %c0_i32_0 = arith.constant 0 : i32
    %c0_i32_1 = arith.constant 0 : i32
    return %c0_i32, %c0_i32_0 : i32, i32
  }
  func.func @transform_5(%arg0: i32) -> (i32, i32, i32) {
    %c0_i32 = arith.constant 0 : i32
    %c0_i32_0 = arith.constant 0 : i32
    %c0_i32_1 = arith.constant 0 : i32
    return %arg0, %c0_i32, %c0_i32_0 : i32, i32, i32
  }
}

</mosaic_0001>

<llo_original>
// kernel: tpu_custom_call.1
$region0: #{tpu_custom_call.1}
  #allocation0 [shape = 'u32[]', space=smem, size = 0x4, offset = 0x4, fixed_abs, tag = 'smem constant byte address 0x4 - core index']
  #allocation1 [shape = 'u32[72,128]{1,0:T(1,128)}', space=vmem, size = 0x9000, scoped, tag = 'internal scratch']
  #allocation2 [shape = 'f32[6,12,16]{2,1,0:T(8,128)}', space=vmem, size = 0xc000, scoped, tag = 'scratch operand']
  %s0 = inlined_call_operand.vmem [shape: f32[6,8,16], index: 0, kind: input, shape index: {}]
  %s1 = inlined_call_operand.vmem [shape: f32[80,16], index: 1, kind: input, shape index: {}]
  %s2 = inlined_call_operand.vmem [shape: f32[1,16], index: 2, kind: input, shape index: {}]
  %s3 = inlined_call_operand.vmem [shape: f32[16,128], index: 3, kind: input, shape index: {}]
  %s4 = inlined_call_operand.vmem [shape: f32[1,128], index: 4, kind: input, shape index: {}]
  %s5 = inlined_call_operand.hbm [shape: f32[6,8,128], index: 5, kind: output, shape index: {}]
  %s6 = sld [smem:[#allocation0]]
  $region30: #{tpu_custom_call.1} parent=0
    _
  %s8 = ssub.s32 1, %s6
  %s9 = scalar_select 0, %s8, %s6
  $region1: #{tpu_custom_call.1} parent=0
    #allocation3 [shape = 'u8[24576]{0}', space=vmem, size = 0x6000, scoped, tag = 'output window, operand 0, single buffered']
    #allocation4 [shape = 's32[1]{0}', space=sflag, size = 0x4, scoped, tag = 'scoped memory for tpu_custom_call.1']
    %10 = vsyncpa [#allocation4], 0
    // Predicated region
    $region2: #{tpu_custom_call.1} parent=1 // pred_check
      _
    $region3: #{tpu_custom_call.1} parent=1 // pred_check_branch
      %12 = sbr.rel (0) target = $region5
    $region4: #{tpu_custom_call.1} parent=1 // pred_region
      _
    $region5: #{tpu_custom_call.1} parent=1 // pred_fallthru
      _
    // Predicated region
    $region6: #{tpu_custom_call.1} parent=1 // pred_check
      _
    $region7: #{tpu_custom_call.1} parent=1 // pred_check_branch
      %14 = sbr.rel (0) target = $region9
    $region8: #{tpu_custom_call.1} parent=1 // pred_region
      _
    $region9: #{tpu_custom_call.1} parent=1 // pred_fallthru
      _
    // Predicated region
    $region10: #{tpu_custom_call.1} parent=1 // pred_check
      _
    $region11: #{tpu_custom_call.1} parent=1 // pred_check_branch
      %16 = sbr.rel (0) target = $region13
    $region12: #{tpu_custom_call.1} parent=1 // pred_region
      _
    $region13: #{tpu_custom_call.1} parent=1 // pred_fallthru
      _
    // Predicated region
    $region14: #{tpu_custom_call.1} parent=1 // pred_check
      _
    $region15: #{tpu_custom_call.1} parent=1 // pred_check_branch
      %18 = sbr.rel (0) target = $region17
    $region16: #{tpu_custom_call.1} parent=1 // pred_region
      _
    $region17: #{tpu_custom_call.1} parent=1 // pred_fallthru
      _
    // Predicated region
    $region18: #{tpu_custom_call.1} parent=1 // pred_check
      _
    $region19: #{tpu_custom_call.1} parent=1 // pred_check_branch
      %20 = sbr.rel (0) target = $region21
    $region20: #{tpu_custom_call.1} parent=1 // pred_region
      _
    $region21: #{tpu_custom_call.1} parent=1 // pred_fallthru
      _
    %vm21 = vcmask 123904
    %22 = vst.msk [vmem:[#allocation2] sm:$0x3] %vm21, 0.0
    %23 = vst.msk [vmem:[#allocation2 + $0x10] sm:$0x3] %vm21, 0.0
    %24 = vst.msk [vmem:[#allocation2 + $0x20] sm:$0x3] %vm21, 0.0
    %25 = vst.msk [vmem:[#allocation2 + $0x30] sm:$0x3] %vm21, 0.0
    %26 = vst.msk [vmem:[#allocation2 + $0x40] sm:$0x3] %vm21, 0.0
    %27 = vst.msk [vmem:[#allocation2 + $0x50] sm:$0x3] %vm21, 0.0
    %28 = vst.msk [vmem:[#allocation2 + $0xa] sm:$0x3] %vm21, 0.0
    %29 = vst.msk [vmem:[#allocation2 + $0x1a] sm:$0x3] %vm21, 0.0
    %30 = vst.msk [vmem:[#allocation2 + $0x2a] sm:$0x3] %vm21, 0.0
    %31 = vst.msk [vmem:[#allocation2 + $0x3a] sm:$0x3] %vm21, 0.0
    %32 = vst.msk [vmem:[#allocation2 + $0x4a] sm:$0x3] %vm21, 0.0
    %33 = vst.msk [vmem:[#allocation2 + $0x5a] sm:$0x3] %vm21, 0.0
    %v34 = vld [vmem:[%s0] sm:$0xff]
    %v35 = vld [vmem:[%s0 + $0x8] sm:$0xff]
    %v36 = vld [vmem:[%s0 + $0x10] sm:$0xff]
    %v37 = vld [vmem:[%s0 + $0x18] sm:$0xff]
    %v38 = vld [vmem:[%s0 + $0x20] sm:$0xff]
    %v39 = vld [vmem:[%s0 + $0x28] sm:$0xff]
    %vm40 = vcmask 130048
    %41 = vst.msk [vmem:[#allocation2 + $0x2] sm:$0xff] %vm40, %v34
    %42 = vst.msk [vmem:[#allocation2 + $0x12] sm:$0xff] %vm40, %v35
    %43 = vst.msk [vmem:[#allocation2 + $0x22] sm:$0xff] %vm40, %v36
    %44 = vst.msk [vmem:[#allocation2 + $0x32] sm:$0xff] %vm40, %v37
    %45 = vst.msk [vmem:[#allocation2 + $0x42] sm:$0xff] %vm40, %v38
    %46 = vst.msk [vmem:[#allocation2 + $0x52] sm:$0xff] %vm40, %v39
    %v47 = vld [vmem:[#allocation2] sm:$0xff]
    %v48 = vld [vmem:[#allocation2 + $0x10] sm:$0xff]
    %v49 = vld [vmem:[#allocation2 + $0x20] sm:$0xff]
    %v50 = vld [vmem:[#allocation2 + $0x30] sm:$0xff]
    %v51 = vld [vmem:[#allocation2 + $0x40] sm:$0xff]
    %v52 = vld [vmem:[#allocation2 + $0x50] sm:$0xff]
    %v53 = vld [vmem:[#allocation2 + $0x1] sm:$0xff]
    %v54 = vld [vmem:[#allocation2 + $0x11] sm:$0xff]
    %v55 = vld [vmem:[#allocation2 + $0x21] sm:$0xff]
    %v56 = vld [vmem:[#allocation2 + $0x31] sm:$0xff]
    %v57 = vld [vmem:[#allocation2 + $0x41] sm:$0xff]
    %v58 = vld [vmem:[#allocation2 + $0x51] sm:$0xff]
    %v59 = vld [vmem:[#allocation2 + $0x2] sm:$0xff]
    %v60 = vld [vmem:[#allocation2 + $0x12] sm:$0xff]
    %v61 = vld [vmem:[#allocation2 + $0x22] sm:$0xff]
    %v62 = vld [vmem:[#allocation2 + $0x32] sm:$0xff]
    %v63 = vld [vmem:[#allocation2 + $0x42] sm:$0xff]
    %v64 = vld [vmem:[#allocation2 + $0x52] sm:$0xff]
    %v65 = vld [vmem:[#allocation2 + $0x3] sm:$0xff]
    %v66 = vld [vmem:[#allocation2 + $0x13] sm:$0xff]
    %v67 = vld [vmem:[#allocation2 + $0x23] sm:$0xff]
    %v68 = vld [vmem:[#allocation2 + $0x33] sm:$0xff]
    %v69 = vld [vmem:[#allocation2 + $0x43] sm:$0xff]
    %v70 = vld [vmem:[#allocation2 + $0x53] sm:$0xff]
    %v71 = vld [vmem:[#allocation2 + $0x4] sm:$0xff]
    %v72 = vld [vmem:[#allocation2 + $0x14] sm:$0xff]
    %v73 = vld [vmem:[#allocation2 + $0x24] sm:$0xff]
    %v74 = vld [vmem:[#allocation2 + $0x34] sm:$0xff]
    %v75 = vld [vmem:[#allocation2 + $0x44] sm:$0xff]
    %v76 = vld [vmem:[#allocation2 + $0x54] sm:$0xff]
    %83 = vrot.lane.b32.xlu0 %v53, 16
    %v84 = vpop.permute.xlu0 %83
    %85 = vrot.lane.b32.xlu0 %v54, 16
    %v86 = vpop.permute.xlu0 %85
    %87 = vrot.lane.b32.xlu0 %v55, 16
    %v88 = vpop.permute.xlu0 %87
    %89 = vrot.lane.b32.xlu0 %v56, 16
    %v90 = vpop.permute.xlu0 %89
    %91 = vrot.lane.b32.xlu0 %v57, 16
    %v92 = vpop.permute.xlu0 %91
    %93 = vrot.lane.b32.xlu0 %v58, 16
    %v94 = vpop.permute.xlu0 %93
    %107 = vrot.lane.b32.xlu0 %v59, 32
    %v108 = vpop.permute.xlu0 %107
    %109 = vrot.lane.b32.xlu0 %v60, 32
    %v110 = vpop.permute.xlu0 %109
    %111 = vrot.lane.b32.xlu0 %v61, 32
    %v112 = vpop.permute.xlu0 %111
    %113 = vrot.lane.b32.xlu0 %v62, 32
    %v114 = vpop.permute.xlu0 %113
    %115 = vrot.lane.b32.xlu0 %v63, 32
    %v116 = vpop.permute.xlu0 %115
    %117 = vrot.lane.b32.xlu0 %v64, 32
    %v118 = vpop.permute.xlu0 %117
    %131 = vrot.lane.b32.xlu0 %v65, 48
    %v132 = vpop.permute.xlu0 %131
    %133 = vrot.lane.b32.xlu0 %v66, 48
    %v134 = vpop.permute.xlu0 %133
    %135 = vrot.lane.b32.xlu0 %v67, 48
    %v136 = vpop.permute.xlu0 %135
    %137 = vrot.lane.b32.xlu0 %v68, 48
    %v138 = vpop.permute.xlu0 %137
    %139 = vrot.lane.b32.xlu0 %v69, 48
    %v140 = vpop.permute.xlu0 %139
    %141 = vrot.lane.b32.xlu0 %v70, 48
    %v142 = vpop.permute.xlu0 %141
    %155 = vrot.lane.b32.xlu0 %v71, 64
    %v156 = vpop.permute.xlu0 %155
    %157 = vrot.lane.b32.xlu0 %v72, 64
    %v158 = vpop.permute.xlu0 %157
    %159 = vrot.lane.b32.xlu0 %v73, 64
    %v160 = vpop.permute.xlu0 %159
    %161 = vrot.lane.b32.xlu0 %v74, 64
    %v162 = vpop.permute.xlu0 %161
    %163 = vrot.lane.b32.xlu0 %v75, 64
    %v164 = vpop.permute.xlu0 %163
    %165 = vrot.lane.b32.xlu0 %v76, 64
    %v166 = vpop.permute.xlu0 %165
    %v173 = vsel %vm40, %v47, %v84
    %v174 = vsel %vm40, %v48, %v86
    %v175 = vsel %vm40, %v49, %v88
    %v176 = vsel %vm40, %v50, %v90
    %v177 = vsel %vm40, %v51, %v92
    %v178 = vsel %vm40, %v52, %v94
    %vm179 = vcmask 261120
    %v180 = vsel %vm179, %v173, %v108
    %v181 = vsel %vm179, %v174, %v110
    %v182 = vsel %vm179, %v175, %v112
    %v183 = vsel %vm179, %v176, %v114
    %v184 = vsel %vm179, %v177, %v116
    %v185 = vsel %vm179, %v178, %v118
    %vm186 = vcmask 392192
    %v187 = vsel %vm186, %v180, %v132
    %v188 = vsel %vm186, %v181, %v134
    %v189 = vsel %vm186, %v182, %v136
    %v190 = vsel %vm186, %v183, %v138
    %v191 = vsel %vm186, %v184, %v140
    %v192 = vsel %vm186, %v185, %v142
    %vm193 = vcmask 523264
    %v194 = vsel %vm193, %v187, %v156
    %v195 = vsel %vm193, %v188, %v158
    %v196 = vsel %vm193, %v189, %v160
    %v197 = vsel %vm193, %v190, %v162
    %v198 = vsel %vm193, %v191, %v164
    %v199 = vsel %vm193, %v192, %v166
    %v200 = vld [vmem:[%s1] sm:$0xff]
    %v201 = vld [vmem:[%s1 + $0x8] sm:$0xff]
    %v202 = vld [vmem:[%s1 + $0x10] sm:$0xff]
    %v203 = vld [vmem:[%s1 + $0x18] sm:$0xff]
    %v204 = vld [vmem:[%s1 + $0x20] sm:$0xff]
    %v205 = vld [vmem:[%s1 + $0x28] sm:$0xff]
    %v206 = vld [vmem:[%s1 + $0x30] sm:$0xff]
    %v207 = vld [vmem:[%s1 + $0x38] sm:$0xff]
    %v208 = vld [vmem:[%s1 + $0x40] sm:$0xff]
    %v209 = vld [vmem:[%s1 + $0x48] sm:$0xff]
    %v210 = vld [vmem:[%s2] sm:$0x1]
    %v212 = vperm.slane %v210, 0
    %vm214 = vcmask 654336
    %v216 = vsel %vm214, %v194, 0
    %v219 = vsel %vm214, %v195, 0
    %v222 = vsel %vm214, %v196, 0
    %v225 = vsel %vm214, %v197, 0
    %v228 = vsel %vm214, %v198, 0
    %v231 = vsel %vm214, %v199, 0
    %233 = vmatpush.msra.mxu0 0.0
    %234 = vmatpush.msra.mxu0 0.0
    %235 = vmatpush.msra.mxu0 0.0
    %236 = vmatpush.msra.mxu0 0.0
    %237 = vmatpush.msra.mxu0 0.0
    %238 = vmatpush.msra.mxu0 0.0
    %239 = vmatpush.msra.mxu0 %v209
    %240 = vmatpush.msra.mxu0 %v208
    %241 = vmatpush.msra.mxu0 %v207
    %242 = vmatpush.msra.mxu0 %v206
    %243 = vmatpush.msra.mxu0 %v205
    %244 = vmatpush.msra.mxu0 %v204
    %245 = vmatpush.msra.mxu0 %v203
    %246 = vmatpush.msra.mxu0 %v202
    %247 = vmatpush.msra.mxu0 %v201
    %248 = vmatpush.msra.mxu0 %v200
    %249 = vmatmul.f32.gmra.mxu0 %v216
    %v250 = vpop.f32.mrf.mxu0
    %v251 = vadd.f32 %v212, %v250
    %252 = vmatmul.f32.gmra.mxu0 %v219
    %v253 = vpop.f32.mrf.mxu0
    %v254 = vadd.f32 %v212, %v253
    %255 = vmatmul.f32.gmra.mxu0 %v222
    %v256 = vpop.f32.mrf.mxu0
    %v257 = vadd.f32 %v212, %v256
    %258 = vmatmul.f32.gmra.mxu0 %v225
    %v259 = vpop.f32.mrf.mxu0
    %v260 = vadd.f32 %v212, %v259
    %261 = vmatmul.f32.gmra.mxu0 %v228
    %v262 = vpop.f32.mrf.mxu0
    %v263 = vadd.f32 %v212, %v262
    %264 = vmatmul.f32.gmra.mxu0 %v231
    %v265 = vpop.f32.mrf.mxu0
    %v266 = vadd.f32 %v212, %v265
    %267 = vdwg.mxu0
    %v268 = vmax.f32 %v251, 0.0
    %v269 = vmax.f32 %v254, 0.0
    %v270 = vmax.f32 %v257, 0.0
    %v271 = vmax.f32 %v260, 0.0
    %v272 = vmax.f32 %v263, 0.0
    %v273 = vmax.f32 %v266, 0.0
    %v274 = vld [vmem:[%s3] sm:$0xff]
    %v275 = vld [vmem:[%s3 + $0x8] sm:$0xff]
    %v276 = vld [vmem:[%s4] sm:$0x1]
    %v278 = vperm.slane %v276, 0
    %v281 = vsel %vm40, %v268, 0
    %v284 = vsel %vm40, %v269, 0
    %v287 = vsel %vm40, %v270, 0
    %v290 = vsel %vm40, %v271, 0
    %v293 = vsel %vm40, %v272, 0
    %v296 = vsel %vm40, %v273, 0
    %298 = vmatpush.msra.mxu0 0.0
    %299 = vmatpush.msra.mxu0 0.0
    %300 = vmatpush.msra.mxu0 0.0
    %301 = vmatpush.msra.mxu0 0.0
    %302 = vmatpush.msra.mxu0 0.0
    %303 = vmatpush.msra.mxu0 0.0
    %304 = vmatpush.msra.mxu0 0.0
    %305 = vmatpush.msra.mxu0 0.0
    %306 = vmatpush.msra.mxu0 0.0
    %307 = vmatpush.msra.mxu0 0.0
    %308 = vmatpush.msra.mxu0 0.0
    %309 = vmatpush.msra.mxu0 0.0
    %310 = vmatpush.msra.mxu0 0.0
    %311 = vmatpush.msra.mxu0 0.0
    %312 = vmatpush.msra.mxu0 %v275
    %313 = vmatpush.msra.mxu0 %v274
    %314 = vmatmul.f32.gmra.mxu0 %v281
    %v315 = vpop.f32.mrf.mxu0
    %v316 = vadd.f32 %v278, %v315
    %317 = vmatmul.f32.gmra.mxu0 %v284
    %v318 = vpop.f32.mrf.mxu0
    %v319 = vadd.f32 %v278, %v318
    %320 = vmatmul.f32.gmra.mxu0 %v287
    %v321 = vpop.f32.mrf.mxu0
    %v322 = vadd.f32 %v278, %v321
    %323 = vmatmul.f32.gmra.mxu0 %v290
    %v324 = vpop.f32.mrf.mxu0
    %v325 = vadd.f32 %v278, %v324
    %326 = vmatmul.f32.gmra.mxu0 %v293
    %v327 = vpop.f32.mrf.mxu0
    %v328 = vadd.f32 %v278, %v327
    %329 = vmatmul.f32.gmra.mxu0 %v296
    %v330 = vpop.f32.mrf.mxu0
    %v331 = vadd.f32 %v278, %v330
    %332 = vdwg.mxu0
    %333 = vst [vmem:[#allocation3] sm:$0xff] %v316
    %334 = vst [vmem:[#allocation3 + $0x8] sm:$0xff] %v319
    %335 = vst [vmem:[#allocation3 + $0x10] sm:$0xff] %v322
    %336 = vst [vmem:[#allocation3 + $0x18] sm:$0xff] %v325
    %337 = vst [vmem:[#allocation3 + $0x20] sm:$0xff] %v328
    %338 = vst [vmem:[#allocation3 + $0x28] sm:$0xff] %v331
    // Predicated region
    $region22: #{tpu_custom_call.1} parent=1 // pred_check
      _
    $region23: #{tpu_custom_call.1} parent=1 // pred_check_branch
      %340 = sbr.rel (0) target = $region25
    $region24: #{tpu_custom_call.1} parent=1 // pred_region
      %342 = vsyncadd [#allocation4], 0
      %s343 = sshll.u32 [#allocation3], 4
      %s344 = int_to_ptr.vmem [resolvable:$true] %s343
      %s345 = sshll.u32 %s5, 4
      %s346 = int_to_ptr.hbm [resolvable:$true] %s345
      %351 = dma.vmem_to_hbm [thread:$0]  %s344, 768, %s346, [#allocation4], 128, 128, 8
    $region25: #{tpu_custom_call.1} parent=1 // pred_fallthru
      _
    // Predicated region
    $region26: #{tpu_custom_call.1} parent=1 // pred_check
      _
    $region27: #{tpu_custom_call.1} parent=1 // pred_check_branch
      %353 = sbr.rel (0) target = $region29
    $region28: #{tpu_custom_call.1} parent=1 // pred_region
      %355 = dma.done [#allocation4], 768
    $region29: #{tpu_custom_call.1} parent=1 // pred_fallthru
      _
    %356 = vsyncpa [#allocation4], 1

</llo_original>
